<compile_context>
chip_gen: v6e
topology: v6e:2x2x1
jax: 0.10.0
libtpu: 0.0.40
codegen_flags: <defaults>
</compile_context>

<pallas_src>
import jax
import jax.numpy as jnp
from jax.experimental import pallas as pl
from jax.experimental.pallas import tpu as pltpu


def _concat_pool_kernel(x_ref, o_ref):
    # x_ref: (1, C, H*W) VMEM tile for one batch element.
    # o_ref: (1, 2, C)   -> [:, 0, :] = max over HW, [:, 1, :] = mean over HW.
    hw = x_ref.shape[-1]
    x = x_ref[...].astype(jnp.float32)          # (1, C, HW), f32 accumulation
    mx = jnp.max(x, axis=-1)                    # (1, C)   cross-lane reduce (XLU)
    avg = jnp.sum(x, axis=-1) * (1.0 / hw)      # (1, C)   mean = sum * static 1/HW
    o_ref[:, 0, :] = mx.astype(o_ref.dtype)
    o_ref[:, 1, :] = avg.astype(o_ref.dtype)


@jax.jit
def adaptive_concat_pool2d(x):
    """x: (B, C, H, W) -> (B, 2*C, 1, 1), channels = [maxpool | avgpool]."""
    B, C, H, W = x.shape
    HW = H * W
    x3 = x.reshape(B, C, HW)                    # pure row-major reshape, no copy

    out = pl.pallas_call(
        _concat_pool_kernel,
        out_shape=jax.ShapeDtypeStruct((B, 2, C), x.dtype),
        grid=(B,),
        in_specs=[pl.BlockSpec((1, C, HW), lambda b: (b, 0, 0))],
        out_specs=pl.BlockSpec((1, 2, C), lambda b: (b, 0, 0)),
        compiler_params=pltpu.CompilerParams(
            dimension_semantics=("parallel",),
        ),
    )(x3)

    # (B, 2, C) row-major flatten == cat([max_ch0..C-1, avg_ch0..C-1]) on dim 1.
    return out.reshape(B, 2 * C, 1, 1)


class AdaptiveConcatPool2d:
    """JAX/Pallas port of the PyTorch AdaptiveConcatPool2d module."""

    def __init__(self, sz=None):
        sz = sz or (1, 1)
        self.sz = tuple(sz)
        if self.sz != (1, 1):
            # TODO(synk): general adaptive output sizes (uneven spatial bins) are
            # not implemented; only the module's default sz=(1,1) global pooling.
            raise NotImplementedError("Only sz=(1, 1) is supported.")

    def __call__(self, x):
        return adaptive_concat_pool2d(x)


if __name__ == "__main__":
    key = jax.random.PRNGKey(0)

    batch, channels, height, width = 2, 4, 16, 16
    x = jax.random.normal(key, (batch, channels, height, width), jnp.float32)

    model = AdaptiveConcatPool2d()
    out = model(x)
    out = jax.block_until_ready(out)

    assert out.shape == (batch, 2 * channels, 1, 1)

    # Reference check against plain JAX reductions (torch.cat([mp, ap], 1)).
    ref_max = jnp.max(x, axis=(2, 3))
    ref_avg = jnp.mean(x, axis=(2, 3))
    ref = jnp.concatenate([ref_max, ref_avg], axis=1).reshape(
        batch, 2 * channels, 1, 1
    )
    assert jnp.allclose(out, ref, atol=1e-5, rtol=1e-5)

    print("KERNEL_OK")
</pallas_src>

<mosaic_0001>
module attributes {stable_mosaic.version = 11 : i64} {
  func.func @_concat_pool_kernel(%arg0: i32, %arg1: memref<1x4x256xf32, #tpu.memory_space<vmem>>, %arg2: memref<1x2x4xf32, #tpu.memory_space<vmem>>) attributes {dimension_semantics = [#tpu.dimension_semantics<parallel>], iteration_bounds = array<i64: 2>, scalar_prefetch = 0 : i64, scratch_operands = 0 : i64, tpu.core_type = #tpu.core_type<tc>, window_params = [{transform_indices = @transform_0, window_bounds = array<i64: 1, 4, 256>}, {transform_indices = @transform_1, window_bounds = array<i64: 1, 2, 4>}]} {
    %c0 = arith.constant 0 : index
    %c0_0 = arith.constant 0 : index
    %c0_1 = arith.constant 0 : index
    %0 = vector.load %arg1[%c0, %c0_0, %c0_1] : memref<1x4x256xf32, #tpu.memory_space<vmem>>, vector<1x4x256xf32>
    %cst = arith.constant dense<0xFF800000> : vector<1x4xf32>
    %1 = vector.multi_reduction <maximumf>, %0, %cst [2] : vector<1x4x256xf32> to vector<1x4xf32>
    %cst_2 = arith.constant dense<0.000000e+00> : vector<1x4xf32>
    %2 = vector.multi_reduction <add>, %0, %cst_2 [2] : vector<1x4x256xf32> to vector<1x4xf32>
    %cst_3 = arith.constant 3.906250e-03 : f32
    %3 = vector.broadcast %cst_3 : f32 to vector<1x4xf32>
    %4 = arith.mulf %2, %3 : vector<1x4xf32>
    %c0_4 = arith.constant 0 : index
    %c0_5 = arith.constant 0 : index
    %c0_6 = arith.constant 0 : index
    %5 = vector.load %arg2[%c0_4, %c0_5, %c0_6] : memref<1x2x4xf32, #tpu.memory_space<vmem>>, vector<1x1x4xf32>
    %6 = vector.shape_cast %5 : vector<1x1x4xf32> to vector<1x4xf32>
    %7 = vector.shape_cast %1 : vector<1x4xf32> to vector<1x1x4xf32>
    tpu.vector_store %arg2[%c0_4, %c0_5, %c0_6], %7 {strides = array<i32>} : memref<1x2x4xf32, #tpu.memory_space<vmem>>, vector<1x1x4xf32>,
    %c0_7 = arith.constant 0 : index
    %c1 = arith.constant 1 : index
    %c0_8 = arith.constant 0 : index
    %8 = vector.load %arg2[%c0_7, %c1, %c0_8] : memref<1x2x4xf32, #tpu.memory_space<vmem>>, vector<1x1x4xf32>
    %9 = vector.shape_cast %8 : vector<1x1x4xf32> to vector<1x4xf32>
    %10 = vector.shape_cast %4 : vector<1x4xf32> to vector<1x1x4xf32>
    tpu.vector_store %arg2[%c0_7, %c1, %c0_8], %10 {strides = array<i32>} : memref<1x2x4xf32, #tpu.memory_space<vmem>>, vector<1x1x4xf32>,
    return
  }
  func.func @transform_0(%arg0: i32) -> (i32, i32, i32) {
    %c0_i32 = arith.constant 0 : i32
    %c0_i32_0 = arith.constant 0 : i32
    %c0_i32_1 = arith.constant 0 : i32
    return %arg0, %c0_i32, %c0_i32_0 : i32, i32, i32
  }
  func.func @transform_1(%arg0: i32) -> (i32, i32, i32) {
    %c0_i32 = arith.constant 0 : i32
    %c0_i32_0 = arith.constant 0 : i32
    %c0_i32_1 = arith.constant 0 : i32
    return %arg0, %c0_i32, %c0_i32_0 : i32, i32, i32
  }
}

</mosaic_0001>

<llo_original>
// kernel: adaptive_concat_pool2d.1
$region0: #{adaptive_concat_pool2d.1}
  #allocation0 [shape = 'u32[]', space=smem, size = 0x4, offset = 0x4, fixed_abs, tag = 'smem constant byte address 0x4 - core index']
  #allocation1 [shape = 'u32[144,128]{1,0:T(1,128)}', space=vmem, size = 0x12000, scoped, tag = 'internal scratch']
  %s0 = inlined_call_operand.vmem [shape: f32[2,4,256], index: 0, kind: input, shape index: {}]
  %s1 = inlined_call_operand.vmem [shape: f32[2,2,4], index: 1, kind: output, shape index: {}]
  %s2 = sld [smem:[#allocation0]]
  $region37: #{adaptive_concat_pool2d.1} parent=0
    _
  %s4 = ssub.s32 1, %s2
  %s5 = scalar_select 0, %s4, %s2
  loop: start=0, step=1, limit=4
  $region2: #{adaptive_concat_pool2d.1} parent=0 // loop_pre_header
    _
  $region3: #{adaptive_concat_pool2d.1} parent=0 // loop_header
    %s7 = sphi 0, %s11
    %p8 = scmp.ge.s32.totalorder %s7, 4
    %s17 = sphi 0, %s19
    %s20 = sphi 0, %s17
    %s21 = sphi 0, %s20
    %s37 = sphi 0, %s21
    %s43 = sphi 0, %s45
    %s46 = sphi 0, %s43
    %s47 = sphi 0, %s46
    %s63 = sphi 0, %s47
  $region4: #{adaptive_concat_pool2d.1} parent=0 // loop_header_branch
    %10 = sbr.rel (%p8) target = $region8
  $region5: #{adaptive_concat_pool2d.1} parent=0 // loop_body
    %s12 = ssub.s32 %s7, 1
    %s13 = ssub.s32 %s7, 2
    %s14 = sadd.s32 %s7, 1
    %s15 = ssub.s32 %s7, %s14
    %p16 = scmp.eq.s32.totalorder %s15, 0
    %s18 = sadd.s32 %s17, 1
    %s19 = scalar_select %p16, %s17, %s18
    %p22 = pneg %p16
    %p23 = scmp.eq.s32.totalorder %s7, 1
    %p24 = por %p22, %p23
    %p25 = scmp.ne.s32.totalorder %s17, %s20
    %p26 = scmp.eq.s32.totalorder %s7, 0
    %p27 = por %p25, %p26
    %p28 = scmp.ne.s32.totalorder %s17, %s20
    %p29 = scmp.eq.s32.totalorder %s12, 1
    %p30 = por %p28, %p29
    %p31 = scmp.ne.s32.totalorder %s20, %s21
    %p32 = scmp.eq.s32.totalorder %s12, 0
    %p33 = por %p31, %p32
    %p34 = scmp.ne.s32.totalorder %s20, %s21
    %p35 = scmp.eq.s32.totalorder %s13, 1
    %p36 = por %p34, %p35
    %p38 = scmp.ne.s32.totalorder %s21, %s37
    %p39 = scmp.eq.s32.totalorder %s13, 0
    %p40 = por %p38, %p39
    %s41 = ssub.s32 %s7, %s14
    %p42 = scmp.eq.s32.totalorder %s41, 0
    %s44 = sadd.s32 %s43, 1
    %s45 = scalar_select %p42, %s43, %s44
    %p48 = pneg %p42
    %p49 = scmp.eq.s32.totalorder %s7, 1
    %p50 = por %p48, %p49
    %p51 = scmp.ne.s32.totalorder %s43, %s46
    %p52 = scmp.eq.s32.totalorder %s7, 0
    %p53 = por %p51, %p52
    %p54 = scmp.ne.s32.totalorder %s43, %s46
    %p55 = scmp.eq.s32.totalorder %s12, 1
    %p56 = por %p54, %p55
    %p57 = scmp.ne.s32.totalorder %s46, %s47
    %p58 = scmp.eq.s32.totalorder %s12, 0
    %p59 = por %p57, %p58
    %p60 = scmp.ne.s32.totalorder %s46, %s47
    %p61 = scmp.eq.s32.totalorder %s13, 1
    %p62 = por %p60, %p61
    %p64 = scmp.ne.s32.totalorder %s47, %s63
    %p65 = scmp.eq.s32.totalorder %s13, 0
    %p66 = por %p64, %p65
    %p67 = scmp.le.s32.totalorder 1, %s7
    %p68 = scmp.lt.s32.totalorder %s7, 3
    %p69 = pnand %p67, %p68
    %p70 = pneg %p69
    // Predicated region
    $region9: #{adaptive_concat_pool2d.1} parent=5 // pred_check
      _
    $region10: #{adaptive_concat_pool2d.1} parent=5 // pred_check_branch
      %72 = sbr.rel (%p69) target = $region12
    $region11: #{adaptive_concat_pool2d.1} parent=5 // pred_region
      %s73 = ssub.s32 %s7, 1
    $region12: #{adaptive_concat_pool2d.1} parent=5 // pred_fallthru
      _
    %p74 = scmp.lt.s32.totalorder %s7, 2
    // Predicated region
    $region13: #{adaptive_concat_pool2d.1} parent=5 // pred_check
      %p75 = pneg %p74
    $region14: #{adaptive_concat_pool2d.1} parent=5 // pred_check_branch
      %77 = sbr.rel (%p75) target = $region16
    $region15: #{adaptive_concat_pool2d.1} parent=5 // pred_region
      // Predicated region
      $region17: #{adaptive_concat_pool2d.1} parent=15 // pred_check
        %p78 = pneg %p27
      $region18: #{adaptive_concat_pool2d.1} parent=15 // pred_check_branch
        %80 = sbr.rel (%p78) target = $region20
      $region19: #{adaptive_concat_pool2d.1} parent=15 // pred_region
        %p81 = scmp.lt.s32.totalorder %s7, 1
        %s82 = scalar_select %p81, %s7, 1
        %s83 = smul.addr %s82, 2
        %s84 = smul.addr %s83, 4
        %s85 = scalar_lea.vmem %s0, %s84
      $region20: #{adaptive_concat_pool2d.1} parent=15 // pred_fallthru
        _
    $region16: #{adaptive_concat_pool2d.1} parent=5 // pred_fallthru
      _
    %p86 = scmp.le.s32.totalorder 1, %s7
    %p87 = scmp.lt.s32.totalorder %s7, 3
    %p88 = pnand %p86, %p87
    %p89 = pneg %p88
    // Predicated region
    $region21: #{adaptive_concat_pool2d.1} parent=5 // pred_check
      _
    $region22: #{adaptive_concat_pool2d.1} parent=5 // pred_check_branch
      %91 = sbr.rel (%p88) target = $region24
    $region23: #{adaptive_concat_pool2d.1} parent=5 // pred_region
      %s92 = ssub.s32 %s7, 1
      %p93 = scmp.lt.s32.totalorder %s12, 1
      %s94 = scalar_select %p93, %s12, 1
      %s95 = smul.addr %s94, 2
      %s96 = smul.addr %s95, 4
      %s97 = scalar_lea.vmem %s0, %s96
      %p98 = pneg %p33
      %p99 = pneg %p30
      %p100 = pneg %p59
      %p101 = pneg %p56
      %p102 = scmp.lt.s32.totalorder %s12, 1
      %s103 = scalar_select %p102, %s12, 1
      %s104 = smul.addr %s103, 2
      %s105 = scalar_lea.vmem %s1, %s104
      %p106 = scmp.lt.s32.totalorder %s12, 1
      %s107 = scalar_select %p106, %s12, 1
      %s108 = smul.addr %s107, 2
      %s109 = smul.addr %s108, 4
      %s110 = scalar_lea.vmem %s0, %s109
      %p111 = scmp.lt.s32.totalorder %s12, 1
      %s112 = scalar_select %p111, %s12, 1
      %s113 = smul.addr %s112, 2
      %s114 = scalar_lea.vmem %s1, %s113
      %v115 = vld [vmem:[%s110] sm:$0xff]
      %v117 = vcombine.high %v115, %v115
      %vm119 = vcmask 1043456
      %v120 = vsel %vm119, %v115, -inf
      %v121 = vsel %vm119, %v117, -inf
      %v122 = vmax.f32 %v120, %v121
      %123 = vmax.xlane.f32.xlu0 %v122
      %v124 = vpop.xlane.xlu0 %123
      %v125 = vsel %vm119, %v115, 0.0
      %v126 = vsel %vm119, %v117, 0.0
      %v127 = vadd.f32 %v125, %v126
      %128 = vadd.xlane.f32.xlu0 %v127
      %v129 = vpop.xlane.xlu0 %128
      %v130 = vmul.f32 %v129, 0.00390625
      %v132 = vlaneseq
      %v133 = vand.u32 %v132, 127
      %v134 = vlaneseq
      %v135 = vshrl.u32 %v134, 7
      %v136 = vsub.s32 %v133, %v135
      %v137 = vrot.slane %v124, %v136
      %vm139 = vcmask 24576
      %140 = vst.msk [vmem:[%s114] sm:$0x1] %vm139, %v137
      %v142 = vlaneseq
      %v143 = vshrl.u32 %v142, 7
      %v144 = vsub.s32 %v133, %v143
      %v145 = vrot.slane %v130, %v144
      %147 = vst.msk [vmem:[%s114 + $0x1] sm:$0x1] %vm139, %v145
      %p148 = scmp.lt.s32.totalorder %s12, 1
      %s149 = scalar_select %p148, %s12, 1
      %s150 = smul.addr %s149, 2
      %s151 = scalar_lea.vmem %s1, %s150
      // Predicated region
      $region25: #{adaptive_concat_pool2d.1} parent=23 // pred_check
        %p152 = pneg %p56
      $region26: #{adaptive_concat_pool2d.1} parent=23 // pred_check_branch
        %154 = sbr.rel (%p152) target = $region28
      $region27: #{adaptive_concat_pool2d.1} parent=23 // pred_region
        _
      $region28: #{adaptive_concat_pool2d.1} parent=23 // pred_fallthru
        _
    $region24: #{adaptive_concat_pool2d.1} parent=5 // pred_fallthru
      _
    %p155 = scmp.le.s32.totalorder 2, %s7
    // Predicated region
    $region29: #{adaptive_concat_pool2d.1} parent=5 // pred_check
      %p156 = pneg %p155
    $region30: #{adaptive_concat_pool2d.1} parent=5 // pred_check_branch
      %158 = sbr.rel (%p156) target = $region32
    $region31: #{adaptive_concat_pool2d.1} parent=5 // pred_region
      %s159 = ssub.s32 %s7, 2
      // Predicated region
      $region33: #{adaptive_concat_pool2d.1} parent=31 // pred_check
        %p160 = pneg %p62
      $region34: #{adaptive_concat_pool2d.1} parent=31 // pred_check_branch
        %162 = sbr.rel (%p160) target = $region36
      $region35: #{adaptive_concat_pool2d.1} parent=31 // pred_region
        %p163 = scmp.lt.s32.totalorder %s13, 1
        %s164 = scalar_select %p163, %s13, 1
        %s165 = smul.addr %s164, 2
        %s166 = scalar_lea.vmem %s1, %s165
      $region36: #{adaptive_concat_pool2d.1} parent=31 // pred_fallthru
        _
    $region32: #{adaptive_concat_pool2d.1} parent=5 // pred_fallthru
      _
  $region6: #{adaptive_concat_pool2d.1} parent=0 // loop_footer
    %s11 = sadd.s32 1, %s7
  $region7: #{adaptive_concat_pool2d.1} parent=0 // loop_footer_branch
    %6 = sbr.rel target = $region3
  $region8: #{adaptive_concat_pool2d.1} parent=0 // loop_exit
    _

</llo_original>
